<compile_context>
chip_gen: v7x
topology: tpu7x:2x2x1
jax: 0.10.0
libtpu: 0.0.40
codegen_flags: <defaults>
</compile_context>

<pallas_src>
import jax
import jax.numpy as jnp
from jax.experimental import pallas as pl
from jax.experimental.pallas import tpu as pltpu


# ----------------------------------------------------------------------------- helpers
def _cdiv(a, b):
    return (a + b - 1) // b


def _round_up(a, b):
    return _cdiv(a, b) * b


def _balanced_tile(total, max_tile, align):
    """Largest aligned tile <= ~max_tile that splits `total` into near-equal blocks."""
    full = _round_up(total, align)
    if full <= max_tile:
        return full                                   # one block covers the whole axis
    tile_cap = max(align, (max_tile // align) * align)
    nblocks = _cdiv(total, tile_cap)
    return _round_up(_cdiv(total, nblocks), align)    # balanced, no mostly-masked edge


def _vmem_budget():
    """(max_block_bytes, vmem_limit_bytes, multi_core) chosen per TPU generation."""
    try:
        cap = int(pltpu.get_tpu_info().vmem_capacity_bytes)
    except Exception:
        cap = 128 * 1024 * 1024
    if cap <= 64 * 1024 * 1024:
        # v7x-class: 64 MiB VMEM per TC, 2 TCs/chip.  Keep 4*block + params well
        # inside a 32 MiB scoped budget and make sure megacore has >= 2 blocks.
        return 6 * 1024 * 1024, 32 * 1024 * 1024, True
    # v5e / v6e: 128 MiB physical VMEM -> bigger blocks amortize per-step overhead.
    return 8 * 1024 * 1024, 64 * 1024 * 1024, False


# ----------------------------------------------------------------------------- kernel
def rprelu_kernel(x_ref, p_ref, o_ref):
    x = x_ref[...].astype(jnp.float32)   # (TR, TL); no-op cast for f32 inputs
    neg_b1 = p_ref[:, 0:1]               # (TR, 1): -beta1
    gamma = p_ref[:, 1:2]                # (TR, 1): gamma
    c_pos = p_ref[:, 2:3]                # (TR, 1): beta1 + beta2
    c_neg = p_ref[:, 3:4]                # (TR, 1): gamma*beta1 + beta2
    y = jnp.where(x > neg_b1, x + c_pos, x * gamma + c_neg)
    o_ref[...] = y.astype(o_ref.dtype)


# ----------------------------------------------------------------------------- wrapper
def prepare_rprelu_params(gamma, beta1, beta2, n):
    """Pre-combined per-row constants, shape (n*C, 4), f32.

    Hoist this out of per-call paths when the same layer is applied repeatedly.
    """
    C = gamma.reshape(-1).shape[0]
    g = gamma.reshape(C).astype(jnp.float32)
    b1 = beta1.reshape(C).astype(jnp.float32)
    b2 = beta2.reshape(C).astype(jnp.float32)
    params_c = jnp.stack([-b1, g, b1 + b2, g * b1 + b2], axis=-1)   # (C, 4)
    return jnp.tile(params_c, (n, 1))                               # (n*C, 4)


def rprelu_from_params(x, params, *, max_block_bytes=None, donate_x=False):
    """x: (N, C, H, W); params: (N*C, 4) f32 from prepare_rprelu_params."""
    N, C, H, W = x.shape
    R, L = N * C, H * W
    dtype = x.dtype
    itemsize = jnp.dtype(dtype).itemsize
    sublane = 8 * max(1, 4 // itemsize)   # 8 (f32), 16 (bf16), 32 (int8)
    lane = 128

    budget, vmem_limit, multi_core = _vmem_budget()
    if max_block_bytes is not None:
        budget = max(int(max_block_bytes), sublane * lane * itemsize)

    # Lane tile first (contiguous DMA, unmasked lane-dense stores), then rows.
    lane_budget = max(lane, budget // (sublane * itemsize))
    tl = _balanced_tile(L, lane_budget, lane)
    row_budget = max(sublane, budget // (tl * itemsize))
    tr = _balanced_tile(R, row_budget, sublane)

    nr, nl = _cdiv(R, tr), _cdiv(L, tl)
    if multi_core and nr * nl < 2:
        # Give both v7x TensorCores a block: split rows if possible, else lanes.
        if R > sublane:
            tr = _round_up(_cdiv(R, 2), sublane)
        elif L > lane:
            tl = _round_up(_cdiv(L, 2), lane)
        nr, nl = _cdiv(R, tr), _cdiv(L, tl)

    xr = x.reshape(R, L)
    params = params.astype(jnp.float32)

    out = pl.pallas_call(
        rprelu_kernel,
        out_shape=jax.ShapeDtypeStruct((R, L), dtype),
        grid=(nr, nl),
        in_specs=[
            pl.BlockSpec((tr, tl), lambda r, l: (r, l)),
            pl.BlockSpec((tr, 4), lambda r, l: (r, 0)),
        ],
        out_specs=pl.BlockSpec((tr, tl), lambda r, l: (r, l)),
        compiler_params=pltpu.CompilerParams(
            dimension_semantics=("parallel", "parallel"),
            vmem_limit_bytes=vmem_limit,
        ),
        input_output_aliases=({0: 0} if donate_x else {}),
    )(xr, params)
    return out.reshape(N, C, H, W)


def rprelu(x, gamma, beta1, beta2, *, max_block_bytes=None, donate_x=False):
    """x: (N, C, H, W); gamma/beta1/beta2: (1, C, 1, 1). Returns (N, C, H, W)."""
    N = x.shape[0]
    params = prepare_rprelu_params(gamma, beta1, beta2, N)
    return rprelu_from_params(x, params, max_block_bytes=max_block_bytes,
                              donate_x=donate_x)


def rprelu_reference(x, gamma, beta1, beta2):
    xs = x + beta1
    return jnp.where(xs > 0, xs + beta2, xs * gamma + beta2)


# ----------------------------------------------------------------------------- tests
if __name__ == "__main__":
    init = 0.25
    key = jax.random.PRNGKey(0)
    kx, kb1, kb2, kx2 = jax.random.split(key, 4)

    # Test 1: module-convention shapes (params are (1, C, 1, 1)).
    N, C, H, W = 2, 4, 16, 16
    x = jax.random.normal(kx, (N, C, H, W), dtype=jnp.float32)
    gamma = jnp.ones((1, C, 1, 1), dtype=jnp.float32) * init
    beta1 = 0.1 * jax.random.normal(kb1, (1, C, 1, 1), dtype=jnp.float32)
    beta2 = 0.1 * jax.random.normal(kb2, (1, C, 1, 1), dtype=jnp.float32)

    out = jax.block_until_ready(rprelu(x, gamma, beta1, beta2))
    ref = rprelu_reference(x, gamma, beta1, beta2)
    assert out.shape == (N, C, H, W)
    assert jnp.allclose(out, ref, atol=1e-5, rtol=1e-5), "mismatch vs reference"

    # Test 2: force a multi-block grid via a tiny block budget (exercises tiling,
    # balanced edge tiles, and masked boundaries).
    N2, C2, H2, W2 = 2, 16, 16, 24   # R = 32 rows, L = 384 lanes
    x2 = jax.random.normal(kx2, (N2, C2, H2, W2), dtype=jnp.float32)
    gamma2 = jnp.ones((1, C2, 1, 1), dtype=jnp.float32) * init
    beta1_2 = 0.05 * jnp.arange(C2, dtype=jnp.float32).reshape(1, C2, 1, 1)
    beta2_2 = -0.03 * jnp.arange(C2, dtype=jnp.float32).reshape(1, C2, 1, 1)

    out2 = jax.block_until_ready(
        rprelu(x2, gamma2, beta1_2, beta2_2, max_block_bytes=8 * 128 * 4))
    ref2 = rprelu_reference(x2, gamma2, beta1_2, beta2_2)
    assert jnp.allclose(out2, ref2, atol=1e-5, rtol=1e-5), "mismatch (multi-block)"

    # Test 3: bf16 activations with f32 params (compute kept in f32 in-kernel).
    x3 = x.astype(jnp.bfloat16)
    out3 = jax.block_until_ready(rprelu(x3, gamma, beta1, beta2))
    ref3 = rprelu_reference(x3, gamma, beta1, beta2)   # promotes to f32
    assert out3.dtype == jnp.bfloat16
    assert jnp.allclose(out3.astype(jnp.float32), ref3, atol=2e-2, rtol=2e-2), \
        "mismatch (bf16)"

    print("KERNEL_OK")
</pallas_src>

<mosaic_0001>
module attributes {stable_mosaic.version = 11 : i64} {
  func.func @rprelu_kernel(%arg0: i32, %arg1: i32, %arg2: memref<8x256xf32, #tpu.memory_space<vmem>>, %arg3: memref<8x4xf32, #tpu.memory_space<vmem>>, %arg4: memref<8x256xf32, #tpu.memory_space<vmem>>) attributes {dimension_semantics = [#tpu.dimension_semantics<parallel>, #tpu.dimension_semantics<parallel>], iteration_bounds = array<i64: 1, 1>, scalar_prefetch = 0 : i64, scratch_operands = 0 : i64, tpu.core_type = #tpu.core_type<tc>, window_params = [{transform_indices = @transform_0, window_bounds = array<i64: 8, 256>}, {transform_indices = @transform_1, window_bounds = array<i64: 8, 4>}, {transform_indices = @transform_2, window_bounds = array<i64: 8, 256>}]} {
    %c0 = arith.constant 0 : index
    %c0_0 = arith.constant 0 : index
    %0 = vector.load %arg2[%c0, %c0_0] : memref<8x256xf32, #tpu.memory_space<vmem>>, vector<8x256xf32>
    %c0_1 = arith.constant 0 : index
    %c0_2 = arith.constant 0 : index
    %1 = vector.load %arg3[%c0_1, %c0_2] : memref<8x4xf32, #tpu.memory_space<vmem>>, vector<8x1xf32>
    %c0_3 = arith.constant 0 : index
    %c1 = arith.constant 1 : index
    %2 = vector.load %arg3[%c0_3, %c1] : memref<8x4xf32, #tpu.memory_space<vmem>>, vector<8x1xf32>
    %c0_4 = arith.constant 0 : index
    %c2 = arith.constant 2 : index
    %3 = vector.load %arg3[%c0_4, %c2] : memref<8x4xf32, #tpu.memory_space<vmem>>, vector<8x1xf32>
    %c0_5 = arith.constant 0 : index
    %c3 = arith.constant 3 : index
    %4 = vector.load %arg3[%c0_5, %c3] : memref<8x4xf32, #tpu.memory_space<vmem>>, vector<8x1xf32>
    %5 = vector.broadcast %1 : vector<8x1xf32> to vector<8x256xf32>
    %6 = arith.cmpf ogt, %0, %5 : vector<8x256xf32>
    %7 = vector.broadcast %3 : vector<8x1xf32> to vector<8x256xf32>
    %8 = arith.addf %0, %7 : vector<8x256xf32>
    %9 = vector.broadcast %2 : vector<8x1xf32> to vector<8x256xf32>
    %10 = arith.mulf %0, %9 : vector<8x256xf32>
    %11 = vector.broadcast %4 : vector<8x1xf32> to vector<8x256xf32>
    %12 = arith.addf %10, %11 : vector<8x256xf32>
    %13 = arith.select %6, %8, %12 : vector<8x256xi1>, vector<8x256xf32>
    %c0_6 = arith.constant 0 : index
    %c0_7 = arith.constant 0 : index
    %14 = vector.load %arg4[%c0_6, %c0_7] : memref<8x256xf32, #tpu.memory_space<vmem>>, vector<8x256xf32>
    tpu.vector_store %arg4[%c0_6, %c0_7], %13 {strides = array<i32>} : memref<8x256xf32, #tpu.memory_space<vmem>>, vector<8x256xf32>,
    return
  }
  func.func @transform_0(%arg0: i32, %arg1: i32) -> (i32, i32) {
    %c0_i32 = arith.constant 0 : i32
    return %arg0, %arg1 : i32, i32
  }
  func.func @transform_1(%arg0: i32, %arg1: i32) -> (i32, i32) {
    %c0_i32 = arith.constant 0 : i32
    %c0_i32_0 = arith.constant 0 : i32
    return %arg0, %c0_i32 : i32, i32
  }
  func.func @transform_2(%arg0: i32, %arg1: i32) -> (i32, i32) {
    %c0_i32 = arith.constant 0 : i32
    return %arg0, %arg1 : i32, i32
  }
}

</mosaic_0001>

<llo_original>
// kernel: tpu_custom_call.1
$region0: #{tpu_custom_call.1}
  #allocation0 [shape = 'u32[]', space=smem, size = 0x4, offset = 0x4, fixed_abs, tag = 'smem constant byte address 0x4 - core index']
  #allocation1 [shape = 'u32[144,128]{1,0:T(1,128)}', space=vmem, size = 0x12000, scoped, tag = 'internal scratch']
  %s0 = inlined_call_operand.hbm [shape: f32[8,256], index: 0, kind: input, shape index: {}]
  %s1 = inlined_call_operand.hbm [shape: f32[8,4], index: 1, kind: input, shape index: {}]
  %s2 = inlined_call_operand.hbm [shape: f32[8,256], index: 2, kind: output, shape index: {}]
  %s3 = sld [smem:[#allocation0]]
  $region26: #{tpu_custom_call.1} parent=0
    _
  %s5 = ssub.s32 1, %s3
  %s6 = scalar_select 0, %s5, %s3
  $region1: #{tpu_custom_call.1} parent=0
    #allocation2 [shape = 'u8[8192]{0}', space=vmem, size = 0x2000, scoped, tag = 'input window, operand 0, single buffered']
    #allocation3 [shape = 's32[1]{0}', space=sflag, size = 0x4, scoped, tag = 'scoped memory for tpu_custom_call.1']
    #allocation4 [shape = 's32[1]{0}', space=sflag, size = 0x4, scoped, tag = 'scoped memory for tpu_custom_call.1']
    #allocation5 [shape = 'u8[4096]{0}', space=vmem, size = 0x1000, scoped, tag = 'input window, operand 1, single buffered']
    #allocation6 [shape = 's32[1]{0}', space=sflag, size = 0x4, scoped, tag = 'scoped memory for tpu_custom_call.1']
    #allocation7 [shape = 'u8[8192]{0}', space=vmem, size = 0x2000, scoped, tag = 'output window, operand 0, single buffered']
    %7 = vsyncpa [#allocation3], 0
    %8 = vsyncpa [#allocation6], 0
    %9 = vsyncpa [#allocation4], 0
    // Predicated region
    $region2: #{tpu_custom_call.1} parent=1 // pred_check
      _
    $region3: #{tpu_custom_call.1} parent=1 // pred_check_branch
      %11 = sbr.rel (0) target = $region5
    $region4: #{tpu_custom_call.1} parent=1 // pred_region
      %s13 = ssub.s32 256, 256
      %14 = vsyncadd [#allocation3], %s13
      %s16 = sshll.u32 [#allocation2], 4
      %s17 = int_to_ptr.vmem [resolvable:$true] %s16
      %19 = dma.hbm_to_vmem [thread:$0]  %s0, 256, %s17, [#allocation3]
    $region5: #{tpu_custom_call.1} parent=1 // pred_fallthru
      _
    // Predicated region
    $region6: #{tpu_custom_call.1} parent=1 // pred_check
      _
    $region7: #{tpu_custom_call.1} parent=1 // pred_check_branch
      %21 = sbr.rel (0) target = $region9
    $region8: #{tpu_custom_call.1} parent=1 // pred_region
      %s23 = ssub.s32 128, 128
      %24 = vsyncadd [#allocation6], %s23
      %s26 = sshll.u32 [#allocation5], 4
      %s27 = int_to_ptr.vmem [resolvable:$true] %s26
      %29 = dma.hbm_to_vmem [thread:$0]  %s1, 128, %s27, [#allocation6]
    $region9: #{tpu_custom_call.1} parent=1 // pred_fallthru
      _
    // Predicated region
    $region10: #{tpu_custom_call.1} parent=1 // pred_check
      _
    $region11: #{tpu_custom_call.1} parent=1 // pred_check_branch
      %31 = sbr.rel (0) target = $region13
    $region12: #{tpu_custom_call.1} parent=1 // pred_region
      %32 = dma.done [#allocation3], 256
    $region13: #{tpu_custom_call.1} parent=1 // pred_fallthru
      _
    // Predicated region
    $region14: #{tpu_custom_call.1} parent=1 // pred_check
      _
    $region15: #{tpu_custom_call.1} parent=1 // pred_check_branch
      %34 = sbr.rel (0) target = $region17
    $region16: #{tpu_custom_call.1} parent=1 // pred_region
      %35 = dma.done [#allocation6], 128
    $region17: #{tpu_custom_call.1} parent=1 // pred_fallthru
      _
    %v36 = vld [vmem:[#allocation2] sm:$0xff]
    %v37 = vld [vmem:[#allocation2 + $0x8] sm:$0xff]
    %v38 = vld [vmem:[#allocation5] sm:$0xff]
    %40 = vset.pattern.permute.xlu0 0
    %41 = vperm.xlu0 %40, %v38
    %v42 = vpop.permute.xlu0 %41
    %vm44 = vcmp.gt.f32.partialorder %v36, %v42
    %vm45 = vcmp.gt.f32.partialorder %v37, %v42
    %46 = vset.pattern.permute.xlu0 2
    %47 = vperm.xlu0 %46, %v38
    %v48 = vpop.permute.xlu0 %47
    %v50 = vadd.f32 %v36, %v48
    %v51 = vadd.f32 %v37, %v48
    %52 = vset.pattern.permute.xlu0 1
    %53 = vperm.xlu0 %52, %v38
    %v54 = vpop.permute.xlu0 %53
    %v56 = vmul.f32 %v36, %v54
    %v57 = vmul.f32 %v37, %v54
    %58 = vset.pattern.permute.xlu0 3
    %59 = vperm.xlu0 %58, %v38
    %v60 = vpop.permute.xlu0 %59
    %v62 = vadd.f32 %v56, %v60
    %v63 = vadd.f32 %v57, %v60
    %v64 = vsel %vm44, %v50, %v62
    %v65 = vsel %vm45, %v51, %v63
    %66 = vst [vmem:[#allocation7] sm:$0xff] %v64
    %67 = vst [vmem:[#allocation7 + $0x8] sm:$0xff] %v65
    // Predicated region
    $region18: #{tpu_custom_call.1} parent=1 // pred_check
      _
    $region19: #{tpu_custom_call.1} parent=1 // pred_check_branch
      %69 = sbr.rel (0) target = $region21
    $region20: #{tpu_custom_call.1} parent=1 // pred_region
      %s71 = ssub.s32 256, 256
      %72 = vsyncadd [#allocation4], %s71
      %s74 = sshll.u32 [#allocation7], 4
      %s75 = int_to_ptr.vmem [resolvable:$true] %s74
      %77 = dma.vmem_to_hbm [thread:$0]  %s75, 256, %s2, [#allocation4]
    $region21: #{tpu_custom_call.1} parent=1 // pred_fallthru
      _
    // Predicated region
    $region22: #{tpu_custom_call.1} parent=1 // pred_check
      _
    $region23: #{tpu_custom_call.1} parent=1 // pred_check_branch
      %79 = sbr.rel (0) target = $region25
    $region24: #{tpu_custom_call.1} parent=1 // pred_region
      %80 = dma.done [#allocation4], 256
    $region25: #{tpu_custom_call.1} parent=1 // pred_fallthru
      _
    %81 = vsyncpa [#allocation3], 1
    %82 = vsyncpa [#allocation6], 1
    %83 = vsyncpa [#allocation4], 1

</llo_original>
